<compile_context>
chip_gen: v7x
topology: tpu7x:2x2x1
jax: 0.10.0
libtpu: 0.0.40
codegen_flags: <defaults>
</compile_context>

<pallas_src>
import jax
import jax.numpy as jnp
from jax.experimental import pallas as pl
from jax.experimental.pallas import tpu as pltpu

_MiB = 1024 * 1024


def attention_kernel(x_ref, wt_ref, b_ref, v_ref, out_ref):
    # x_ref : (TB, S, H)  batch tile of hidden states
    # wt_ref: (H, H)      pre-transposed Linear weight (so y = x @ wt + b)
    # b_ref : (1, H)      Linear bias (f32)
    # v_ref : (1, H)      attention vector v (f32)
    # out_ref: (TB, S)    softmax(scores) for this batch tile (S on the 128-lane axis)
    tb, s, h = x_ref.shape
    x = x_ref[...]

    # One (TB*S, H) @ (H, H) MXU matmul with f32 accumulation, then EUP tanh.
    # The collapse/expand reshapes are layout-preserving (no sublane repack) when S % 8 == 0;
    # for other S they are still correct, just cost one extra VMEM copy.
    x2 = x.reshape(tb * s, h)
    energy = jnp.tanh(
        jnp.dot(x2, wt_ref[...], preferred_element_type=jnp.float32) + b_ref[...]
    )  # (TB*S, H) f32

    # scores = energy @ v done as VPU multiply + XLU lane-reduce over H so the result comes out
    # (TB, S) with S already on the lane axis (no lane-width-1 column vregs).
    scores = jnp.sum(energy.reshape(tb, s, h) * v_ref[...], axis=-1)  # (TB, S) f32

    # Softmax over the sequence axis (PyTorch dim=1) == the lane axis here.
    m = jnp.max(scores, axis=-1, keepdims=True)
    e = jnp.exp(scores - m)
    inv = pl.reciprocal(jnp.sum(e, axis=-1, keepdims=True), approx=True)  # EUP slot
    out_ref[...] = (e * inv).astype(out_ref.dtype)


def _tpu_vmem_capacity_bytes():
    """Physical VMEM of the attached TPU; conservative (v7x-sized) fallback if unavailable."""
    try:
        cap = int(pltpu.get_tpu_info().vmem_capacity_bytes)
        if cap > 0:
            return cap
    except Exception:
        pass
    return 64 * _MiB


def attention_forward(hidden_states, w, b, v, *, stream_dtype=None):
    """hidden_states: (B, S, H); w: (H, H) [PyTorch Linear weight, (out,in)]; b: (H,); v: (H,).

    Returns softmax attention weights of shape (B, S).
    stream_dtype: optionally DMA hidden_states / weight in a narrower dtype (e.g. jnp.bfloat16)
    to halve HBM traffic; compute still accumulates in f32.
    """
    B, S, H = hidden_states.shape
    out_dtype = hidden_states.dtype

    x_in = hidden_states
    wt = jnp.transpose(w)  # (H, H) so the kernel does x @ wt
    if stream_dtype is not None:
        x_in = x_in.astype(stream_dtype)
        wt = wt.astype(stream_dtype)
    b2 = b.reshape(1, H).astype(jnp.float32)
    v2 = v.reshape(1, H).astype(jnp.float32)

    # ---- generation-aware VMEM budget & batch-tile (tb) selection ----
    physical_vmem = _tpu_vmem_capacity_bytes()
    # Scoped limit for this kernel: most of physical VMEM, minus headroom for compiler-internal
    # scratch.  ~100 MiB on 128-MiB parts (v5e/v6e), ~48 MiB on 64-MiB v7x.
    vmem_limit = int(max(32 * _MiB, min(physical_vmem - 16 * _MiB, 100 * _MiB)))

    x_item = jnp.dtype(x_in.dtype).itemsize
    out_item = jnp.dtype(out_dtype).itemsize
    # Grid-invariant operands; counted at 2 buffers to stay safe if the single-buffer request
    # (pl.Buffered(1)) is not honored.
    const_bytes = 2 * (H * H * jnp.dtype(wt.dtype).itemsize) + 4 * (H * 4)
    usable = max(vmem_limit - const_bytes - 2 * _MiB, _MiB)

    # Per-batch-row VMEM: double-buffered x tile + ~2x f32 energy/tanh intermediates (the MXU
    # result must land in VMEM before tanh/reduce) + double-buffered output rows + slack.
    per_row = 2 * S * H * x_item + 2 * S * H * 4 + 2 * S * out_item + 256

    tb = int(min(B, max(1, usable // per_row)))
    if tb < B and tb >= 8:
        tb = (tb // 8) * 8  # sublane-aligned output blocks (8,128 rule)
    tb = max(tb, 1)
    grid_b = pl.cdiv(B, tb)  # ragged last block handled by Pallas masking

    compiler_params = pltpu.CompilerParams(
        dimension_semantics=("parallel",),
        vmem_limit_bytes=vmem_limit,
    )

    def build_call(single_buffer_consts):
        if single_buffer_consts:
            const_specs = [
                pl.BlockSpec((H, H), lambda i: (0, 0), pipeline_mode=pl.Buffered(1)),
                pl.BlockSpec((1, H), lambda i: (0, 0), pipeline_mode=pl.Buffered(1)),
                pl.BlockSpec((1, H), lambda i: (0, 0), pipeline_mode=pl.Buffered(1)),
            ]
        else:
            const_specs = [
                pl.BlockSpec((H, H), lambda i: (0, 0)),
                pl.BlockSpec((1, H), lambda i: (0, 0)),
                pl.BlockSpec((1, H), lambda i: (0, 0)),
            ]
        return pl.pallas_call(
            attention_kernel,
            out_shape=jax.ShapeDtypeStruct((B, S), out_dtype),
            grid=(grid_b,),
            in_specs=[pl.BlockSpec((tb, S, H), lambda i: (i, 0, 0))] + const_specs,
            out_specs=pl.BlockSpec((tb, S), lambda i: (i, 0)),  # lane-dense (S on lanes)
            compiler_params=compiler_params,
        )

    try:
        out = build_call(True)(x_in, wt, b2, v2)
    except Exception:
        # Fallback: let the resident operands use the default (double) buffering.
        out = build_call(False)(x_in, wt, b2, v2)

    return out  # (B, S)


def attention_reference(hidden_states, w, b, v):
    """Plain-JAX reference mirroring the PyTorch forward."""
    energy = jnp.tanh(jnp.einsum("bsh,oh->bso", hidden_states, w) + b)
    scores = jnp.einsum("bsh,h->bs", energy, v)
    return jax.nn.softmax(scores, axis=1)


if __name__ == "__main__":
    B, S, H = 2, 8, 32
    key = jax.random.PRNGKey(0)
    k_x, k_w, k_b, k_v = jax.random.split(key, 4)

    # Deterministic synthetic params (shapes from nn.Linear(H, H) and nn.Parameter(torch.rand(H)))
    bound = 1.0 / jnp.sqrt(H)
    x = jax.random.normal(k_x, (B, S, H), dtype=jnp.float32)
    w = jax.random.uniform(k_w, (H, H), minval=-bound, maxval=bound, dtype=jnp.float32)
    b = jax.random.uniform(k_b, (H,), minval=-bound, maxval=bound, dtype=jnp.float32)
    v = jax.random.uniform(k_v, (H,), minval=0.0, maxval=1.0, dtype=jnp.float32)

    out = attention_forward(x, w, b, v)
    out = jax.block_until_ready(out)

    ref = attention_reference(x, w, b, v)
    assert out.shape == (B, S)
    # Tolerances loosened slightly (~2e-3) because the softmax denominator uses the EUP
    # approximate reciprocal (pl.reciprocal(..., approx=True)) per the perf review.
    assert jnp.allclose(out, ref, atol=2e-3, rtol=0), "mismatch vs reference"
    assert jnp.allclose(jnp.sum(out, axis=1), 1.0, atol=2e-3), "softmax rows must sum to 1"

    print("KERNEL_OK")
</pallas_src>

<mosaic_0001>
module attributes {stable_mosaic.version = 11 : i64} {
  func.func @attention_kernel(%arg0: i32, %arg1: memref<2x8x32xf32, #tpu.memory_space<vmem>>, %arg2: memref<32x32xf32, #tpu.memory_space<vmem>>, %arg3: memref<1x32xf32, #tpu.memory_space<vmem>>, %arg4: memref<1x32xf32, #tpu.memory_space<vmem>>, %arg5: memref<2x8xf32, #tpu.memory_space<vmem>>) attributes {dimension_semantics = [#tpu.dimension_semantics<parallel>], iteration_bounds = array<i64: 1>, scalar_prefetch = 0 : i64, scratch_operands = 0 : i64, tpu.core_type = #tpu.core_type<tc>, window_params = [{transform_indices = @transform_0, window_bounds = array<i64: 2, 8, 32>}, {pipeline_mode = #tpu.pipeline_mode<synchronous>, transform_indices = @transform_1, window_bounds = array<i64: 32, 32>}, {pipeline_mode = #tpu.pipeline_mode<synchronous>, transform_indices = @transform_2, window_bounds = array<i64: 1, 32>}, {pipeline_mode = #tpu.pipeline_mode<synchronous>, transform_indices = @transform_3, window_bounds = array<i64: 1, 32>}, {transform_indices = @transform_4, window_bounds = array<i64: 2, 8>}]} {
    %c0 = arith.constant 0 : index
    %c0_0 = arith.constant 0 : index
    %c0_1 = arith.constant 0 : index
    %0 = vector.load %arg1[%c0, %c0_0, %c0_1] : memref<2x8x32xf32, #tpu.memory_space<vmem>>, vector<2x8x32xf32>
    %1 = vector.shape_cast %0 : vector<2x8x32xf32> to vector<16x32xf32>
    %c0_2 = arith.constant 0 : index
    %c0_3 = arith.constant 0 : index
    %2 = vector.load %arg2[%c0_2, %c0_3] : memref<32x32xf32, #tpu.memory_space<vmem>>, vector<32x32xf32>
    %cst = arith.constant dense<0.000000e+00> : vector<16x32xf32>
    %3 = tpu.matmul %1, %2, %cst {dimension_numbers = #tpu.dot_dimension_numbers<[1], [0], [0], [1], [0, 0, 1, 1], [], []>} : vector<16x32xf32>, vector<32x32xf32>, vector<16x32xf32> -> vector<16x32xf32>
    %c0_4 = arith.constant 0 : index
    %c0_5 = arith.constant 0 : index
    %4 = vector.load %arg3[%c0_4, %c0_5] : memref<1x32xf32, #tpu.memory_space<vmem>>, vector<1x32xf32>
    %5 = vector.broadcast %4 : vector<1x32xf32> to vector<16x32xf32>
    %6 = arith.addf %3, %5 : vector<16x32xf32>
    %7 = math.tanh %6 : vector<16x32xf32>
    %8 = vector.shape_cast %7 : vector<16x32xf32> to vector<2x8x32xf32>
    %c0_6 = arith.constant 0 : index
    %c0_7 = arith.constant 0 : index
    %9 = vector.load %arg4[%c0_6, %c0_7] : memref<1x32xf32, #tpu.memory_space<vmem>>, vector<1x32xf32>
    %10 = vector.shape_cast %9 : vector<1x32xf32> to vector<1x1x32xf32>
    %11 = vector.broadcast %10 : vector<1x1x32xf32> to vector<2x8x32xf32>
    %12 = arith.mulf %8, %11 : vector<2x8x32xf32>
    %cst_8 = arith.constant dense<0.000000e+00> : vector<2x8xf32>
    %13 = vector.multi_reduction <add>, %12, %cst_8 [2] : vector<2x8x32xf32> to vector<2x8xf32>
    %cst_9 = arith.constant dense<0xFF800000> : vector<2xf32>
    %14 = vector.multi_reduction <maximumf>, %13, %cst_9 [1] : vector<2x8xf32> to vector<2xf32>
    %15 = vector.shape_cast %14 : vector<2xf32> to vector<2x1xf32>
    %16 = vector.broadcast %15 : vector<2x1xf32> to vector<2x8xf32>
    %17 = arith.subf %13, %16 : vector<2x8xf32>
    %18 = math.exp %17 : vector<2x8xf32>
    %cst_10 = arith.constant dense<0.000000e+00> : vector<2xf32>
    %19 = vector.multi_reduction <add>, %18, %cst_10 [1] : vector<2x8xf32> to vector<2xf32>
    %20 = vector.shape_cast %19 : vector<2xf32> to vector<2x1xf32>
    %21 = tpu.reciprocal %20 {approx = true} : vector<2x1xf32> -> vector<2x1xf32>
    %22 = vector.broadcast %21 : vector<2x1xf32> to vector<2x8xf32>
    %23 = arith.mulf %18, %22 : vector<2x8xf32>
    %c0_11 = arith.constant 0 : index
    %c0_12 = arith.constant 0 : index
    %24 = vector.load %arg5[%c0_11, %c0_12] : memref<2x8xf32, #tpu.memory_space<vmem>>, vector<2x8xf32>
    tpu.vector_store %arg5[%c0_11, %c0_12], %23 {strides = array<i32>} : memref<2x8xf32, #tpu.memory_space<vmem>>, vector<2x8xf32>,
    return
  }
  func.func @transform_0(%arg0: i32) -> (i32, i32, i32) {
    %c0_i32 = arith.constant 0 : i32
    %c0_i32_0 = arith.constant 0 : i32
    %c0_i32_1 = arith.constant 0 : i32
    return %arg0, %c0_i32, %c0_i32_0 : i32, i32, i32
  }
  func.func @transform_1(%arg0: i32) -> (i32, i32) {
    %c0_i32 = arith.constant 0 : i32
    %c0_i32_0 = arith.constant 0 : i32
    %c0_i32_1 = arith.constant 0 : i32
    return %c0_i32, %c0_i32_0 : i32, i32
  }
  func.func @transform_2(%arg0: i32) -> (i32, i32) {
    %c0_i32 = arith.constant 0 : i32
    %c0_i32_0 = arith.constant 0 : i32
    %c0_i32_1 = arith.constant 0 : i32
    return %c0_i32, %c0_i32_0 : i32, i32
  }
  func.func @transform_3(%arg0: i32) -> (i32, i32) {
    %c0_i32 = arith.constant 0 : i32
    %c0_i32_0 = arith.constant 0 : i32
    %c0_i32_1 = arith.constant 0 : i32
    return %c0_i32, %c0_i32_0 : i32, i32
  }
  func.func @transform_4(%arg0: i32) -> (i32, i32) {
    %c0_i32 = arith.constant 0 : i32
    %c0_i32_0 = arith.constant 0 : i32
    return %arg0, %c0_i32 : i32, i32
  }
}

module attributes {stable_mosaic.version = 11 : i64} {
  func.func @attention_kernel(%arg0: i32, %arg1: memref<2x8x32xf32, #tpu.memory_space<vmem>>, %arg2: memref<32x32xf32, #tpu.memory_space<vmem>>, %arg3: memref<1x32xf32, #tpu.memory_space<vmem>>, %arg4: memref<1x32xf32, #tpu.memory_space<vmem>>, %arg5: memref<2x8xf32, #tpu.memory_space<vmem>>) attributes {dimension_semantics = [#tpu.dimension_semantics<parallel>], iteration_bounds = array<i64: 1>, scalar_prefetch = 0 : i64, scratch_operands = 0 : i64, tpu.core_type = #tpu.core_type<tc>, window_params = [{transform_indices = @transform_0, window_bounds = array<i64: 2, 8, 32>}, {pipeline_mode = #tpu.pipeline_mode<synchronous>, transform_indices = @transform_1, window_bounds = array<i64: 32, 32>}, {pipeline_mode = #tpu.pipeline_mode<synchronous>, transform_indices = @transform_2, window_bounds = array<i64: 1, 32>}, {pipeline_mode = #tpu.pipeline_mode<synchronous>, transform_indices = @transform_3, window_bounds = array<i64: 1, 32>}, {transform_indices = @transform_4, window_bounds = array<i64: 2, 8>}]} {
    %c0 = arith.constant 0 : index
    %c0_0 = arith.constant 0 : index
    %c0_1 = arith.constant 0 : index
    %0 = vector.load %arg1[%c0, %c0_0, %c0_1] : memref<2x8x32xf32, #tpu.memory_space<vmem>>, vector<2x8x32xf32>
    %1 = vector.shape_cast %0 : vector<2x8x32xf32> to vector<16x32xf32>
    %c0_2 = arith.constant 0 : index
    %c0_3 = arith.constant 0 : index
    %2 = vector.load %arg2[%c0_2, %c0_3] : memref<32x32xf32, #tpu.memory_space<vmem>>, vector<32x32xf32>
    %cst = arith.constant dense<0.000000e+00> : vector<16x32xf32>
    %3 = tpu.matmul %1, %2, %cst {dimension_numbers = #tpu.dot_dimension_numbers<[1], [0], [0], [1], [0, 0, 1, 1], [], []>} : vector<16x32xf32>, vector<32x32xf32>, vector<16x32xf32> -> vector<16x32xf32>
    %c0_4 = arith.constant 0 : index
    %c0_5 = arith.constant 0 : index
    %4 = vector.load %arg3[%c0_4, %c0_5] : memref<1x32xf32, #tpu.memory_space<vmem>>, vector<1x32xf32>
    %5 = vector.broadcast %4 : vector<1x32xf32> to vector<16x32xf32>
    %6 = arith.addf %3, %5 : vector<16x32xf32>
    %7 = math.tanh %6 : vector<16x32xf32>
    %8 = vector.shape_cast %7 : vector<16x32xf32> to vector<2x8x32xf32>
    %c0_6 = arith.constant 0 : index
    %c0_7 = arith.constant 0 : index
    %9 = vector.load %arg4[%c0_6, %c0_7] : memref<1x32xf32, #tpu.memory_space<vmem>>, vector<1x32xf32>
    %10 = vector.shape_cast %9 : vector<1x32xf32> to vector<1x1x32xf32>
    %11 = vector.broadcast %10 : vector<1x1x32xf32> to vector<2x8x32xf32>
    %12 = arith.mulf %8, %11 : vector<2x8x32xf32>
    %cst_8 = arith.constant dense<0.000000e+00> : vector<2x8xf32>
    %13 = vector.multi_reduction <add>, %12, %cst_8 [2] : vector<2x8x32xf32> to vector<2x8xf32>
    %cst_9 = arith.constant dense<0xFF800000> : vector<2xf32>
    %14 = vector.multi_reduction <maximumf>, %13, %cst_9 [1] : vector<2x8xf32> to vector<2xf32>
    %15 = vector.shape_cast %14 : vector<2xf32> to vector<2x1xf32>
    %16 = vector.broadcast %15 : vector<2x1xf32> to vector<2x8xf32>
    %17 = arith.subf %13, %16 : vector<2x8xf32>
    %18 = math.exp %17 : vector<2x8xf32>
    %cst_10 = arith.constant dense<0.000000e+00> : vector<2xf32>
    %19 = vector.multi_reduction <add>, %18, %cst_10 [1] : vector<2x8xf32> to vector<2xf32>
    %20 = vector.shape_cast %19 : vector<2xf32> to vector<2x1xf32>
    %21 = tpu.reciprocal %20 {approx = true} : vector<2x1xf32> -> vector<2x1xf32>
    %22 = vector.broadcast %21 : vector<2x1xf32> to vector<2x8xf32>
    %23 = arith.mulf %18, %22 : vector<2x8xf32>
    %c0_11 = arith.constant 0 : index
    %c0_12 = arith.constant 0 : index
    %24 = vector.load %arg5[%c0_11, %c0_12] : memref<2x8xf32, #tpu.memory_space<vmem>>, vector<2x8xf32>
    tpu.vector_store %arg5[%c0_11, %c0_12], %23 {strides = array<i32>} : memref<2x8xf32, #tpu.memory_space<vmem>>, vector<2x8xf32>,
    return
  }
  func.func @transform_0(%arg0: i32) -> (i32, i32, i32) {
    %c0_i32 = arith.constant 0 : i32
    %c0_i32_0 = arith.constant 0 : i32
    %c0_i32_1 = arith.constant 0 : i32
    return %arg0, %c0_i32, %c0_i32_0 : i32, i32, i32
  }
  func.func @transform_1(%arg0: i32) -> (i32, i32) {
    %c0_i32 = arith.constant 0 : i32
    %c0_i32_0 = arith.constant 0 : i32
    %c0_i32_1 = arith.constant 0 : i32
    return %c0_i32, %c0_i32_0 : i32, i32
  }
  func.func @transform_2(%arg0: i32) -> (i32, i32) {
    %c0_i32 = arith.constant 0 : i32
    %c0_i32_0 = arith.constant 0 : i32
    %c0_i32_1 = arith.constant 0 : i32
    return %c0_i32, %c0_i32_0 : i32, i32
  }
  func.func @transform_3(%arg0: i32) -> (i32, i32) {
    %c0_i32 = arith.constant 0 : i32
    %c0_i32_0 = arith.constant 0 : i32
    %c0_i32_1 = arith.constant 0 : i32
    return %c0_i32, %c0_i32_0 : i32, i32
  }
  func.func @transform_4(%arg0: i32) -> (i32, i32) {
    %c0_i32 = arith.constant 0 : i32
    %c0_i32_0 = arith.constant 0 : i32
    return %arg0, %c0_i32 : i32, i32
  }
}

</mosaic_0001>

<llo_original>
// kernel: tpu_custom_call.1
$region0: #{tpu_custom_call.1}
  #allocation0 [shape = 'u32[]', space=smem, size = 0x4, offset = 0x4, fixed_abs, tag = 'smem constant byte address 0x4 - core index']
  #allocation1 [shape = 'u32[144,128]{1,0:T(1,128)}', space=vmem, size = 0x12000, scoped, tag = 'internal scratch']
  %s0 = inlined_call_operand.hbm [shape: f32[2,8,32], index: 0, kind: input, shape index: {}]
  %s1 = inlined_call_operand.hbm [shape: f32[32,32], index: 1, kind: input, shape index: {}]
  %s2 = inlined_call_operand.vmem [shape: f32[1,32], index: 2, kind: input, shape index: {}]
  %s3 = inlined_call_operand.vmem [shape: f32[1,32], index: 3, kind: input, shape index: {}]
  %s4 = inlined_call_operand.hbm [shape: f32[2,8], index: 4, kind: output, shape index: {}]
  %s5 = sld [smem:[#allocation0]]
  $region34: #{tpu_custom_call.1} parent=0
    _
  %s7 = ssub.s32 1, %s5
  %s8 = scalar_select 0, %s7, %s5
  $region1: #{tpu_custom_call.1} parent=0
    #allocation2 [shape = 'u8[8192]{0}', space=vmem, size = 0x2000, scoped, tag = 'input window, operand 0, single buffered']
    #allocation3 [shape = 's32[1]{0}', space=sflag, size = 0x4, scoped, tag = 'scoped memory for tpu_custom_call.1']
    #allocation4 [shape = 's32[1]{0}', space=sflag, size = 0x4, scoped, tag = 'scoped memory for tpu_custom_call.1']
    #allocation5 [shape = 'u8[16384]{0}', space=vmem, size = 0x4000, scoped, tag = 'input window, operand 1, single buffered']
    #allocation6 [shape = 's32[1]{0}', space=sflag, size = 0x4, scoped, tag = 'scoped memory for tpu_custom_call.1']
    #allocation7 [shape = 'u8[1024]{0}', space=vmem, size = 0x400, scoped, tag = 'output window, operand 0, single buffered']
    %9 = vsyncpa [#allocation3], 0
    %10 = vsyncpa [#allocation6], 0
    %11 = vsyncpa [#allocation4], 0
    // Predicated region
    $region2: #{tpu_custom_call.1} parent=1 // pred_check
      _
    $region3: #{tpu_custom_call.1} parent=1 // pred_check_branch
      %13 = sbr.rel (0) target = $region5
    $region4: #{tpu_custom_call.1} parent=1 // pred_region
      %s15 = ssub.s32 256, 256
      %16 = vsyncadd [#allocation3], %s15
      %s17 = sshll.u32 [#allocation2], 4
      %s18 = int_to_ptr.vmem [resolvable:$true] %s17
      %23 = dma.hbm_to_vmem [thread:$0]  %s0, 256, %s18, [#allocation3], 128, 128, 8
    $region5: #{tpu_custom_call.1} parent=1 // pred_fallthru
      _
    // Predicated region
    $region6: #{tpu_custom_call.1} parent=1 // pred_check
      _
    $region7: #{tpu_custom_call.1} parent=1 // pred_check_branch
      %25 = sbr.rel (0) target = $region9
    $region8: #{tpu_custom_call.1} parent=1 // pred_region
      %s27 = ssub.s32 512, 512
      %28 = vsyncadd [#allocation6], %s27
      %s29 = sshll.u32 [#allocation5], 4
      %s30 = int_to_ptr.vmem [resolvable:$true] %s29
      %35 = dma.hbm_to_vmem [thread:$0]  %s1, 512, %s30, [#allocation6], 128, 128, 8
    $region9: #{tpu_custom_call.1} parent=1 // pred_fallthru
      _
    // Predicated region
    $region10: #{tpu_custom_call.1} parent=1 // pred_check
      _
    $region11: #{tpu_custom_call.1} parent=1 // pred_check_branch
      %37 = sbr.rel (0) target = $region13
    $region12: #{tpu_custom_call.1} parent=1 // pred_region
      _
    $region13: #{tpu_custom_call.1} parent=1 // pred_fallthru
      _
    // Predicated region
    $region14: #{tpu_custom_call.1} parent=1 // pred_check
      _
    $region15: #{tpu_custom_call.1} parent=1 // pred_check_branch
      %39 = sbr.rel (0) target = $region17
    $region16: #{tpu_custom_call.1} parent=1 // pred_region
      _
    $region17: #{tpu_custom_call.1} parent=1 // pred_fallthru
      _
    // Predicated region
    $region18: #{tpu_custom_call.1} parent=1 // pred_check
      _
    $region19: #{tpu_custom_call.1} parent=1 // pred_check_branch
      %41 = sbr.rel (0) target = $region21
    $region20: #{tpu_custom_call.1} parent=1 // pred_region
      %42 = dma.done [#allocation3], 256
    $region21: #{tpu_custom_call.1} parent=1 // pred_fallthru
      _
    // Predicated region
    $region22: #{tpu_custom_call.1} parent=1 // pred_check
      _
    $region23: #{tpu_custom_call.1} parent=1 // pred_check_branch
      %44 = sbr.rel (0) target = $region25
    $region24: #{tpu_custom_call.1} parent=1 // pred_region
      %45 = dma.done [#allocation6], 512
    $region25: #{tpu_custom_call.1} parent=1 // pred_fallthru
      _
    %v46 = vld [vmem:[#allocation2] sm:$0xff]
    %v47 = vld [vmem:[#allocation2 + $0x8] sm:$0xff]
    %v48 = vld [vmem:[#allocation5] sm:$0xff]
    %v49 = vld [vmem:[#allocation5 + $0x8] sm:$0xff]
    %v50 = vld [vmem:[#allocation5 + $0x10] sm:$0xff]
    %v51 = vld [vmem:[#allocation5 + $0x18] sm:$0xff]
    %v52 = vld [vmem:[%s2] sm:$0x1]
    %v54 = vlaneseq
    %v55 = vshrl.u32 %v54, 7
    %v56 = vsub.s32 0, %v55
    %v57 = vrot.slane %v52, %v56
    %vm59 = vcmask 261120
    %v61 = vsel %vm59, %v46, 0
    %v64 = vsel %vm59, %v47, 0
    %66 = vmatprep.subr.mxu0 0.0
    %67 = vmatpush1.msra.mxu0 %v48
    %68 = vmatprep.subr.mxu0 0.0
    %69 = vmatpush1.msra.mxu0 %v49
    %70 = vmatprep.subr.mxu0 0.0
    %71 = vmatpush1.msra.mxu0 %v50
    %72 = vmatprep.subr.mxu0 0.0
    %73 = vmatpush1.msra.mxu0 %v51
    %74 = vmatprep.subr.mxu0 0.0
    %75 = vmatpush1.msra.mxu0 0.0
    %76 = vmatprep.subr.mxu0 0.0
    %77 = vmatpush1.msra.mxu0 0.0
    %78 = vmatprep.subr.mxu0 0.0
    %79 = vmatpush1.msra.mxu0 0.0
    %80 = vmatprep.subr.mxu0 0.0
    %81 = vmatpush1.msra.mxu0 0.0
    %82 = vmatprep.subr.mxu0 0.0
    %83 = vmatpush1.msra.mxu0 0.0
    %84 = vmatprep.subr.mxu0 0.0
    %85 = vmatpush1.msra.mxu0 0.0
    %86 = vmatprep.subr.mxu0 0.0
    %87 = vmatpush1.msra.mxu0 0.0
    %88 = vmatprep.subr.mxu0 0.0
    %89 = vmatpush1.msra.mxu0 0.0
    %90 = vmatprep.subr.mxu0 0.0
    %91 = vmatpush1.msra.mxu0 0.0
    %92 = vmatprep.subr.mxu0 0.0
    %93 = vmatpush1.msra.mxu0 0.0
    %94 = vmatprep.subr.mxu0 0.0
    %95 = vmatpush1.msra.mxu0 0.0
    %96 = vmatprep.subr.mxu0 0.0
    %97 = vmatpush1.msra.mxu0 0.0
    %98 = vmatprep.subr.mxu0 0.0
    %99 = vmatpush1.msra.mxu0 0.0
    %100 = vmatprep.subr.mxu0 0.0
    %101 = vmatpush1.msra.mxu0 0.0
    %102 = vmatprep.subr.mxu0 0.0
    %103 = vmatpush1.msra.mxu0 0.0
    %104 = vmatprep.subr.mxu0 0.0
    %105 = vmatpush1.msra.mxu0 0.0
    %106 = vmatprep.subr.mxu0 0.0
    %107 = vmatpush1.msra.mxu0 0.0
    %108 = vmatprep.subr.mxu0 0.0
    %109 = vmatpush1.msra.mxu0 0.0
    %110 = vmatprep.subr.mxu0 0.0
    %111 = vmatpush1.msra.mxu0 0.0
    %112 = vmatprep.subr.mxu0 0.0
    %113 = vmatpush1.msra.mxu0 0.0
    %114 = vmatprep.subr.mxu0 0.0
    %115 = vmatpush1.msra.mxu0 0.0
    %116 = vmatprep.subr.mxu0 0.0
    %117 = vmatpush1.msra.mxu0 0.0
    %118 = vmatprep.subr.mxu0 0.0
    %119 = vmatpush1.msra.mxu0 0.0
    %120 = vmatprep.subr.mxu0 0.0
    %121 = vmatpush1.msra.mxu0 0.0
    %122 = vmatprep.subr.mxu0 0.0
    %123 = vmatpush1.msra.mxu0 0.0
    %124 = vmatprep.subr.mxu0 0.0
    %125 = vmatpush1.msra.mxu0 0.0
    %126 = vmatprep.subr.mxu0 0.0
    %127 = vmatpush1.msra.mxu0 0.0
    %128 = vmatprep.subr.mxu0 0.0
    %129 = vmatpush1.msra.mxu0 0.0
    %130 = vmatprep.mubr.f32.mxu0 0.0
    %131 = vmatmul.mubr.f32.gmra.mrb[0].mxu0 %v61
    %v132 = vpop.f32.mrb[0].mxu0
    %v133 = vadd.f32 %v57, %v132
    %v134 = vpop.f32.mrb[0].mxu0
    %135 = vmatprep.mubr.f32.mxu0 0.0
    %136 = vmatmul.mubr.f32.gmra.mrb[0].mxu0 %v64
    %v137 = vpop.f32.mrb[0].mxu0
    %v138 = vadd.f32 %v57, %v137
    %v139 = vpop.f32.mrb[0].mxu0
    %140 = vdwg.mxu0
    %v141 = vtanh.pop %v133
    %v142 = vtanh.pop %v138
    %v143 = vld [vmem:[%s3] sm:$0x1]
    %v145 = vlaneseq
    %v146 = vshrl.u32 %v145, 7
    %v147 = vsub.s32 0, %v146
    %v148 = vrot.slane %v143, %v147
    %v150 = vmul.f32 %v141, %v148
    %v151 = vmul.f32 %v142, %v148
    %v152 = vsel %vm59, %v150, 0.0
    %153 = vadd.xlane.f32.xlu0 %v152
    %v154 = vpop.xlane.xlu0 %153
    %v155 = vsel %vm59, %v151, 0.0
    %156 = vadd.xlane.f32.xlu0 %v155
    %v157 = vpop.xlane.xlu0 %156
    %v160 = vlaneseq
    %v161 = vand.u32 %v160, 127
    %v162 = vlaneseq
    %v163 = vshrl.u32 %v162, 7
    %v164 = vsub.s32 %v161, %v163
    %v165 = vrot.slane %v154, %v164
    %v166 = vlaneseq
    %v167 = vshrl.u32 %v166, 7
    %v168 = vsub.s32 %v161, %v167
    %v169 = vrot.slane %v157, %v168
    %vm170 = vcmask 1041409
    %v171 = vsel %vm170, %v169, %v165
    %vm173 = vcmask 58368
    %v174 = vsel %vm173, %v171, -inf
    %175 = vmax.xlane.f32.xlu0 %v174
    %v176 = vpop.xlane.xlu0 %175
    %v178 = vlaneseq
    %v179 = vshrl.u32 %v178, 7
    %v180 = vsub.s32 0, %v179
    %v181 = vrot.slane %v176, %v180
    %v182 = vlaneseq
    %v183 = vshrl.u32 %v182, 7
    %v184 = vsub.s32 1, %v183
    %v185 = vrot.slane %v176, %v184
    %v188 = vsub.f32 %v154, %v181
    %v189 = vsub.f32 %v157, %v185
    %v190 = vmul.f32 %v188, 1.442695
    %v191 = vpow.pop %v190
    %v192 = vmul.f32 %v189, 1.442695
    %v193 = vpow.pop %v192
    %196 = vset.pattern.permute.xlu0 0
    %197 = vperm.xlu0 %196, %v191
    %v198 = vpop.permute.xlu0 %197
    %199 = vset.pattern.permute.xlu0 0
    %200 = vperm.xlu0 %199, %v193
    %v201 = vpop.permute.xlu0 %200
    %v202 = vlaneseq
    %v203 = vshrl.u32 %v202, 7
    %v204 = vsub.s32 %v161, %v203
    %v205 = vrot.slane %v198, %v204
    %v206 = vlaneseq
    %v207 = vshrl.u32 %v206, 7
    %v208 = vsub.s32 %v161, %v207
    %v209 = vrot.slane %v201, %v208
    %v210 = vsel %vm170, %v209, %v205
    %v212 = vsel %vm173, %v210, 0.0
    %213 = vadd.xlane.f32.xlu0 %v212
    %v214 = vpop.xlane.xlu0 %213
    %v215 = vrcp.pop %v214
    %v217 = vlaneseq
    %v218 = vshrl.u32 %v217, 7
    %v219 = vsub.s32 0, %v218
    %v220 = vrot.slane %v215, %v219
    %v221 = vlaneseq
    %v222 = vshrl.u32 %v221, 7
    %v223 = vsub.s32 1, %v222
    %v224 = vrot.slane %v215, %v223
    %v227 = vmul.f32 %v191, %v220
    %v228 = vmul.f32 %v193, %v224
    %231 = vset.pattern.permute.xlu0 0
    %232 = vperm.xlu0 %231, %v227
    %v233 = vpop.permute.xlu0 %232
    %234 = vset.pattern.permute.xlu0 0
    %235 = vperm.xlu0 %234, %v228
    %v236 = vpop.permute.xlu0 %235
    %v237 = vlaneseq
    %v238 = vshrl.u32 %v237, 7
    %v239 = vsub.s32 %v161, %v238
    %v240 = vrot.slane %v233, %v239
    %v241 = vlaneseq
    %v242 = vshrl.u32 %v241, 7
    %v243 = vsub.s32 %v161, %v242
    %v244 = vrot.slane %v236, %v243
    %v245 = vsel %vm170, %v244, %v240
    %247 = vst.msk [vmem:[#allocation7] sm:$0x3] %vm173, %v245
    // Predicated region
    $region26: #{tpu_custom_call.1} parent=1 // pred_check
      _
    $region27: #{tpu_custom_call.1} parent=1 // pred_check_branch
      %249 = sbr.rel (0) target = $region29
    $region28: #{tpu_custom_call.1} parent=1 // pred_region
      %s251 = ssub.s32 32, 32
      %252 = vsyncadd [#allocation4], %s251
      %s254 = sshll.u32 [#allocation7], 4
      %s255 = int_to_ptr.vmem [resolvable:$true] %s254
      %257 = dma.vmem_to_hbm [thread:$0]  %s255, 32, %s4, [#allocation4]
    $region29: #{tpu_custom_call.1} parent=1 // pred_fallthru
      _
    // Predicated region
    $region30: #{tpu_custom_call.1} parent=1 // pred_check
      _
    $region31: #{tpu_custom_call.1} parent=1 // pred_check_branch
      %259 = sbr.rel (0) target = $region33
    $region32: #{tpu_custom_call.1} parent=1 // pred_region
      %260 = dma.done [#allocation4], 32
    $region33: #{tpu_custom_call.1} parent=1 // pred_fallthru
      _
    %261 = vsyncpa [#allocation3], 1
    %262 = vsyncpa [#allocation6], 1
    %263 = vsyncpa [#allocation4], 1

// kernel: tpu_custom_call.1
$region0: #{tpu_custom_call.1}
  #allocation0 [shape = 'u32[]', space=smem, size = 0x4, offset = 0x4, fixed_abs, tag = 'smem constant byte address 0x4 - core index']
  #allocation1 [shape = 'u32[144,128]{1,0:T(1,128)}', space=vmem, size = 0x12000, scoped, tag = 'internal scratch']
  %s0 = inlined_call_operand.hbm [shape: f32[2,8,32], index: 0, kind: input, shape index: {}]
  %s1 = inlined_call_operand.hbm [shape: f32[32,32], index: 1, kind: input, shape index: {}]
  %s2 = inlined_call_operand.vmem [shape: f32[1,32], index: 2, kind: input, shape index: {}]
  %s3 = inlined_call_operand.vmem [shape: f32[1,32], index: 3, kind: input, shape index: {}]
  %s4 = inlined_call_operand.hbm [shape: f32[2,8], index: 4, kind: output, shape index: {}]
  %s5 = sld [smem:[#allocation0]]
  $region34: #{tpu_custom_call.1} parent=0
    _
  %s7 = ssub.s32 1, %s5
  %s8 = scalar_select 0, %s7, %s5
  $region1: #{tpu_custom_call.1} parent=0
    #allocation2 [shape = 'u8[8192]{0}', space=vmem, size = 0x2000, scoped, tag = 'input window, operand 0, single buffered']
    #allocation3 [shape = 's32[1]{0}', space=sflag, size = 0x4, scoped, tag = 'scoped memory for tpu_custom_call.1']
    #allocation4 [shape = 's32[1]{0}', space=sflag, size = 0x4, scoped, tag = 'scoped memory for tpu_custom_call.1']
    #allocation5 [shape = 'u8[16384]{0}', space=vmem, size = 0x4000, scoped, tag = 'input window, operand 1, single buffered']
    #allocation6 [shape = 's32[1]{0}', space=sflag, size = 0x4, scoped, tag = 'scoped memory for tpu_custom_call.1']
    #allocation7 [shape = 'u8[1024]{0}', space=vmem, size = 0x400, scoped, tag = 'output window, operand 0, single buffered']
    %9 = vsyncpa [#allocation3], 0
    %10 = vsyncpa [#allocation6], 0
    %11 = vsyncpa [#allocation4], 0
    // Predicated region
    $region2: #{tpu_custom_call.1} parent=1 // pred_check
      _
    $region3: #{tpu_custom_call.1} parent=1 // pred_check_branch
      %13 = sbr.rel (0) target = $region5
    $region4: #{tpu_custom_call.1} parent=1 // pred_region
      %s15 = ssub.s32 256, 256
      %16 = vsyncadd [#allocation3], %s15
      %s17 = sshll.u32 [#allocation2], 4
      %s18 = int_to_ptr.vmem [resolvable:$true] %s17
      %23 = dma.hbm_to_vmem [thread:$0]  %s0, 256, %s18, [#allocation3], 128, 128, 8
    $region5: #{tpu_custom_call.1} parent=1 // pred_fallthru
      _
    // Predicated region
    $region6: #{tpu_custom_call.1} parent=1 // pred_check
      _
    $region7: #{tpu_custom_call.1} parent=1 // pred_check_branch
      %25 = sbr.rel (0) target = $region9
    $region8: #{tpu_custom_call.1} parent=1 // pred_region
      %s27 = ssub.s32 512, 512
      %28 = vsyncadd [#allocation6], %s27
      %s29 = sshll.u32 [#allocation5], 4
      %s30 = int_to_ptr.vmem [resolvable:$true] %s29
      %35 = dma.hbm_to_vmem [thread:$0]  %s1, 512, %s30, [#allocation6], 128, 128, 8
    $region9: #{tpu_custom_call.1} parent=1 // pred_fallthru
      _
    // Predicated region
    $region10: #{tpu_custom_call.1} parent=1 // pred_check
      _
    $region11: #{tpu_custom_call.1} parent=1 // pred_check_branch
      %37 = sbr.rel (0) target = $region13
    $region12: #{tpu_custom_call.1} parent=1 // pred_region
      _
    $region13: #{tpu_custom_call.1} parent=1 // pred_fallthru
      _
    // Predicated region
    $region14: #{tpu_custom_call.1} parent=1 // pred_check
      _
    $region15: #{tpu_custom_call.1} parent=1 // pred_check_branch
      %39 = sbr.rel (0) target = $region17
    $region16: #{tpu_custom_call.1} parent=1 // pred_region
      _
    $region17: #{tpu_custom_call.1} parent=1 // pred_fallthru
      _
    // Predicated region
    $region18: #{tpu_custom_call.1} parent=1 // pred_check
      _
    $region19: #{tpu_custom_call.1} parent=1 // pred_check_branch
      %41 = sbr.rel (0) target = $region21
    $region20: #{tpu_custom_call.1} parent=1 // pred_region
      %42 = dma.done [#allocation3], 256
    $region21: #{tpu_custom_call.1} parent=1 // pred_fallthru
      _
    // Predicated region
    $region22: #{tpu_custom_call.1} parent=1 // pred_check
      _
    $region23: #{tpu_custom_call.1} parent=1 // pred_check_branch
      %44 = sbr.rel (0) target = $region25
    $region24: #{tpu_custom_call.1} parent=1 // pred_region
      %45 = dma.done [#allocation6], 512
    $region25: #{tpu_custom_call.1} parent=1 // pred_fallthru
      _
    %v46 = vld [vmem:[#allocation2] sm:$0xff]
    %v47 = vld [vmem:[#allocation2 + $0x8] sm:$0xff]
    %v48 = vld [vmem:[#allocation5] sm:$0xff]
    %v49 = vld [vmem:[#allocation5 + $0x8] sm:$0xff]
    %v50 = vld [vmem:[#allocation5 + $0x10] sm:$0xff]
    %v51 = vld [vmem:[#allocation5 + $0x18] sm:$0xff]
    %v52 = vld [vmem:[%s2] sm:$0x1]
    %v54 = vlaneseq
    %v55 = vshrl.u32 %v54, 7
    %v56 = vsub.s32 0, %v55
    %v57 = vrot.slane %v52, %v56
    %vm59 = vcmask 261120
    %v61 = vsel %vm59, %v46, 0
    %v64 = vsel %vm59, %v47, 0
    %66 = vmatprep.subr.mxu0 0.0
    %67 = vmatpush1.msra.mxu0 %v48
    %68 = vmatprep.subr.mxu0 0.0
    %69 = vmatpush1.msra.mxu0 %v49
    %70 = vmatprep.subr.mxu0 0.0
    %71 = vmatpush1.msra.mxu0 %v50
    %72 = vmatprep.subr.mxu0 0.0
    %73 = vmatpush1.msra.mxu0 %v51
    %74 = vmatprep.subr.mxu0 0.0
    %75 = vmatpush1.msra.mxu0 0.0
    %76 = vmatprep.subr.mxu0 0.0
    %77 = vmatpush1.msra.mxu0 0.0
    %78 = vmatprep.subr.mxu0 0.0
    %79 = vmatpush1.msra.mxu0 0.0
    %80 = vmatprep.subr.mxu0 0.0
    %81 = vmatpush1.msra.mxu0 0.0
    %82 = vmatprep.subr.mxu0 0.0
    %83 = vmatpush1.msra.mxu0 0.0
    %84 = vmatprep.subr.mxu0 0.0
    %85 = vmatpush1.msra.mxu0 0.0
    %86 = vmatprep.subr.mxu0 0.0
    %87 = vmatpush1.msra.mxu0 0.0
    %88 = vmatprep.subr.mxu0 0.0
    %89 = vmatpush1.msra.mxu0 0.0
    %90 = vmatprep.subr.mxu0 0.0
    %91 = vmatpush1.msra.mxu0 0.0
    %92 = vmatprep.subr.mxu0 0.0
    %93 = vmatpush1.msra.mxu0 0.0
    %94 = vmatprep.subr.mxu0 0.0
    %95 = vmatpush1.msra.mxu0 0.0
    %96 = vmatprep.subr.mxu0 0.0
    %97 = vmatpush1.msra.mxu0 0.0
    %98 = vmatprep.subr.mxu0 0.0
    %99 = vmatpush1.msra.mxu0 0.0
    %100 = vmatprep.subr.mxu0 0.0
    %101 = vmatpush1.msra.mxu0 0.0
    %102 = vmatprep.subr.mxu0 0.0
    %103 = vmatpush1.msra.mxu0 0.0
    %104 = vmatprep.subr.mxu0 0.0
    %105 = vmatpush1.msra.mxu0 0.0
    %106 = vmatprep.subr.mxu0 0.0
    %107 = vmatpush1.msra.mxu0 0.0
    %108 = vmatprep.subr.mxu0 0.0
    %109 = vmatpush1.msra.mxu0 0.0
    %110 = vmatprep.subr.mxu0 0.0
    %111 = vmatpush1.msra.mxu0 0.0
    %112 = vmatprep.subr.mxu0 0.0
    %113 = vmatpush1.msra.mxu0 0.0
    %114 = vmatprep.subr.mxu0 0.0
    %115 = vmatpush1.msra.mxu0 0.0
    %116 = vmatprep.subr.mxu0 0.0
    %117 = vmatpush1.msra.mxu0 0.0
    %118 = vmatprep.subr.mxu0 0.0
    %119 = vmatpush1.msra.mxu0 0.0
    %120 = vmatprep.subr.mxu0 0.0
    %121 = vmatpush1.msra.mxu0 0.0
    %122 = vmatprep.subr.mxu0 0.0
    %123 = vmatpush1.msra.mxu0 0.0
    %124 = vmatprep.subr.mxu0 0.0
    %125 = vmatpush1.msra.mxu0 0.0
    %126 = vmatprep.subr.mxu0 0.0
    %127 = vmatpush1.msra.mxu0 0.0
    %128 = vmatprep.subr.mxu0 0.0
    %129 = vmatpush1.msra.mxu0 0.0
    %130 = vmatprep.mubr.f32.mxu0 0.0
    %131 = vmatmul.mubr.f32.gmra.mrb[0].mxu0 %v61
    %v132 = vpop.f32.mrb[0].mxu0
    %v133 = vadd.f32 %v57, %v132
    %v134 = vpop.f32.mrb[0].mxu0
    %135 = vmatprep.mubr.f32.mxu0 0.0
    %136 = vmatmul.mubr.f32.gmra.mrb[0].mxu0 %v64
    %v137 = vpop.f32.mrb[0].mxu0
    %v138 = vadd.f32 %v57, %v137
    %v139 = vpop.f32.mrb[0].mxu0
    %140 = vdwg.mxu0
    %v141 = vtanh.pop %v133
    %v142 = vtanh.pop %v138
    %v143 = vld [vmem:[%s3] sm:$0x1]
    %v145 = vlaneseq
    %v146 = vshrl.u32 %v145, 7
    %v147 = vsub.s32 0, %v146
    %v148 = vrot.slane %v143, %v147
    %v150 = vmul.f32 %v141, %v148
    %v151 = vmul.f32 %v142, %v148
    %v152 = vsel %vm59, %v150, 0.0
    %153 = vadd.xlane.f32.xlu0 %v152
    %v154 = vpop.xlane.xlu0 %153
    %v155 = vsel %vm59, %v151, 0.0
    %156 = vadd.xlane.f32.xlu0 %v155
    %v157 = vpop.xlane.xlu0 %156
    %v160 = vlaneseq
    %v161 = vand.u32 %v160, 127
    %v162 = vlaneseq
    %v163 = vshrl.u32 %v162, 7
    %v164 = vsub.s32 %v161, %v163
    %v165 = vrot.slane %v154, %v164
    %v166 = vlaneseq
    %v167 = vshrl.u32 %v166, 7
    %v168 = vsub.s32 %v161, %v167
    %v169 = vrot.slane %v157, %v168
    %vm170 = vcmask 1041409
    %v171 = vsel %vm170, %v169, %v165
    %vm173 = vcmask 58368
    %v174 = vsel %vm173, %v171, -inf
    %175 = vmax.xlane.f32.xlu0 %v174
    %v176 = vpop.xlane.xlu0 %175
    %v178 = vlaneseq
    %v179 = vshrl.u32 %v178, 7
    %v180 = vsub.s32 0, %v179
    %v181 = vrot.slane %v176, %v180
    %v182 = vlaneseq
    %v183 = vshrl.u32 %v182, 7
    %v184 = vsub.s32 1, %v183
    %v185 = vrot.slane %v176, %v184
    %v188 = vsub.f32 %v154, %v181
    %v189 = vsub.f32 %v157, %v185
    %v190 = vmul.f32 %v188, 1.442695
    %v191 = vpow.pop %v190
    %v192 = vmul.f32 %v189, 1.442695
    %v193 = vpow.pop %v192
    %196 = vset.pattern.permute.xlu0 0
    %197 = vperm.xlu0 %196, %v191
    %v198 = vpop.permute.xlu0 %197
    %199 = vset.pattern.permute.xlu0 0
    %200 = vperm.xlu0 %199, %v193
    %v201 = vpop.permute.xlu0 %200
    %v202 = vlaneseq
    %v203 = vshrl.u32 %v202, 7
    %v204 = vsub.s32 %v161, %v203
    %v205 = vrot.slane %v198, %v204
    %v206 = vlaneseq
    %v207 = vshrl.u32 %v206, 7
    %v208 = vsub.s32 %v161, %v207
    %v209 = vrot.slane %v201, %v208
    %v210 = vsel %vm170, %v209, %v205
    %v212 = vsel %vm173, %v210, 0.0
    %213 = vadd.xlane.f32.xlu0 %v212
    %v214 = vpop.xlane.xlu0 %213
    %v215 = vrcp.pop %v214
    %v217 = vlaneseq
    %v218 = vshrl.u32 %v217, 7
    %v219 = vsub.s32 0, %v218
    %v220 = vrot.slane %v215, %v219
    %v221 = vlaneseq
    %v222 = vshrl.u32 %v221, 7
    %v223 = vsub.s32 1, %v222
    %v224 = vrot.slane %v215, %v223
    %v227 = vmul.f32 %v191, %v220
    %v228 = vmul.f32 %v193, %v224
    %231 = vset.pattern.permute.xlu0 0
    %232 = vperm.xlu0 %231, %v227
    %v233 = vpop.permute.xlu0 %232
    %234 = vset.pattern.permute.xlu0 0
    %235 = vperm.xlu0 %234, %v228
    %v236 = vpop.permute.xlu0 %235
    %v237 = vlaneseq
    %v238 = vshrl.u32 %v237, 7
    %v239 = vsub.s32 %v161, %v238
    %v240 = vrot.slane %v233, %v239
    %v241 = vlaneseq
    %v242 = vshrl.u32 %v241, 7
    %v243 = vsub.s32 %v161, %v242
    %v244 = vrot.slane %v236, %v243
    %v245 = vsel %vm170, %v244, %v240
    %247 = vst.msk [vmem:[#allocation7] sm:$0x3] %vm173, %v245
    // Predicated region
    $region26: #{tpu_custom_call.1} parent=1 // pred_check
      _
    $region27: #{tpu_custom_call.1} parent=1 // pred_check_branch
      %249 = sbr.rel (0) target = $region29
    $region28: #{tpu_custom_call.1} parent=1 // pred_region
      %s251 = ssub.s32 32, 32
      %252 = vsyncadd [#allocation4], %s251
      %s254 = sshll.u32 [#allocation7], 4
      %s255 = int_to_ptr.vmem [resolvable:$true] %s254
      %257 = dma.vmem_to_hbm [thread:$0]  %s255, 32, %s4, [#allocation4]
    $region29: #{tpu_custom_call.1} parent=1 // pred_fallthru
      _
    // Predicated region
    $region30: #{tpu_custom_call.1} parent=1 // pred_check
      _
    $region31: #{tpu_custom_call.1} parent=1 // pred_check_branch
      %259 = sbr.rel (0) target = $region33
    $region32: #{tpu_custom_call.1} parent=1 // pred_region
      %260 = dma.done [#allocation4], 32
    $region33: #{tpu_custom_call.1} parent=1 // pred_fallthru
      _
    %261 = vsyncpa [#allocation3], 1
    %262 = vsyncpa [#allocation6], 1
    %263 = vsyncpa [#allocation4], 1

</llo_original>
